<compile_context>
chip_gen: v7x
topology: tpu7x:2x2x1
jax: 0.10.0
libtpu: 0.0.40
codegen_flags: <defaults>
</compile_context>

<pallas_src>
import jax
import jax.numpy as jnp
from jax.experimental import pallas as pl
from jax.experimental.pallas import tpu as pltpu


def _round_up(x, m):
    return ((x + m - 1) // m) * m


def _round_down(x, m):
    return (x // m) * m


def _vmem_capacity_bytes():
    """Physical VMEM of the current TPU generation (fallback: 128 MiB)."""
    try:
        return int(pltpu.get_tpu_info().vmem_capacity_bytes)
    except Exception:
        return 128 * 1024 * 1024


def _make_fused_kernel(num_layers, slot):
    """Apply `num_layers` bias-free 1x1 convs to their feature tiles and write
    each result into its (8-aligned) channel slot of the fused output tile."""

    def kernel(*refs):
        w_refs = refs[:num_layers]                 # each (slot, C_in_l), zero-padded rows
        x_refs = refs[num_layers:2 * num_layers]   # each (C_in_l, T), pixels on lanes
        o_ref = refs[2 * num_layers]               # (num_layers * slot, T)
        for i in range(num_layers):
            y = jnp.dot(
                w_refs[i][...], x_refs[i][...],
                preferred_element_type=jnp.float32,
            )
            # slot is a multiple of 8 -> sublane-aligned, unmasked store.
            o_ref[i * slot:(i + 1) * slot, :] = y.astype(o_ref.dtype)

    return kernel


def fused_preprocess(features, weights, output_dim):
    """Fused multi-layer 1x1 conv + channel concat.

    features: list of (N, C_in_l, H, W) arrays (same N, H, W across layers,
              as required by the channel concat in the original module).
    weights:  list of (output_dim, C_in_l) arrays.
    Returns (N, len(features) * output_dim, H, W).
    """
    assert len(features) == len(weights) and len(features) > 0
    num_layers = len(features)
    N, _, H, W = features[0].shape
    HW = H * W
    for f in features:
        assert f.shape[0] == N and f.shape[2] == H and f.shape[3] == W, (
            "all feature maps must share (N, H, W) for the channel concat")

    dtype = features[0].dtype
    itemsize = jnp.dtype(dtype).itemsize

    # --- layout padding (lane-dense pixels, sublane-aligned channel slots) ---
    slot = _round_up(output_dim, 8)          # per-layer output channel slot
    total_out = num_layers * slot
    HWp = _round_up(HW, 128)                 # lane-dense pixel axis

    xs = []
    for f in features:
        x = f.reshape(N, f.shape[1], HW).astype(dtype)   # free reshape NCHW -> (N,C,HW)
        if HWp != HW:
            x = jnp.pad(x, ((0, 0), (0, 0), (0, HWp - HW)))
        xs.append(x)

    ws = []
    for w in weights:
        w = w.astype(dtype)
        if slot != output_dim:
            w = jnp.pad(w, ((0, slot - output_dim), (0, 0)))  # zero rows -> zero outputs
        ws.append(w)

    sum_cin = sum(int(x.shape[1]) for x in xs)
    weight_bytes = sum(int(w.size) * itemsize for w in ws)

    # --- pixel tile sized from this generation's VMEM -----------------------
    capacity = _vmem_capacity_bytes()
    budget = int(capacity * 0.6)             # headroom for weights + Mosaic scratch
    # Per grid step the kernel holds (double-buffered) every layer's input tile
    # plus the fused output tile:
    per_lane_bytes = 2 * itemsize * (sum_cin + total_out)
    tile = _round_down(max(128, (budget - 2 * weight_bytes) // per_lane_bytes), 128)
    tile = max(128, min(tile, HWp))

    # Occupancy: make sure v7x's 2 TensorCores each get >=2 grid steps when
    # batch/images are small (0.35us/step is cheap insurance; neutral on 1-TC chips).
    MIN_STEPS = 4
    if N * pl.cdiv(HWp, tile) < MIN_STEPS:
        want_tiles = -(-MIN_STEPS // N)      # ceil(MIN_STEPS / N)
        cand = _round_down(HWp // want_tiles, 128)
        if cand >= 128:
            tile = min(tile, cand)

    n_pix = pl.cdiv(HWp, tile)

    # --- specs ---------------------------------------------------------------
    in_specs = []
    for w in ws:
        # Whole (padded) weight resident; constant block index -> fetched once.
        in_specs.append(pl.BlockSpec(w.shape, lambda p, n: (0, 0)))
    for x in xs:
        c_in = x.shape[1]
        in_specs.append(pl.BlockSpec((None, c_in, tile), lambda p, n: (n, 0, p)))
    out_spec = pl.BlockSpec((None, total_out, tile), lambda p, n: (n, 0, p))

    vmem_needed = per_lane_bytes * tile + 2 * weight_bytes + (2 << 20)
    vmem_limit = int(min(capacity, max(vmem_needed, 32 << 20)))

    flops = 2 * N * HWp * sum(int(w.shape[0]) * int(w.shape[1]) for w in ws)
    bytes_accessed = int(
        sum(int(x.size) for x in xs) * itemsize
        + weight_bytes
        + N * total_out * HWp * itemsize
    )

    out = pl.pallas_call(
        _make_fused_kernel(num_layers, slot),
        out_shape=jax.ShapeDtypeStruct((N, total_out, HWp), dtype),
        grid_spec=pltpu.PrefetchScalarGridSpec(
            num_scalar_prefetch=0,
            grid=(n_pix, N),
            in_specs=in_specs,
            out_specs=out_spec,
        ),
        compiler_params=pltpu.CompilerParams(
            dimension_semantics=("parallel", "parallel"),
            vmem_limit_bytes=vmem_limit,
        ),
        cost_estimate=pl.CostEstimate(
            flops=flops, transcendentals=0, bytes_accessed=bytes_accessed),
    )(*ws, *xs)

    # Strip channel-slot and pixel padding (no-op reshape when nothing was padded).
    out = out.reshape(N, num_layers, slot, HWp)[:, :, :output_dim, :HW]
    return out.reshape(N, num_layers * output_dim, H, W)


class Preprocessing:
    """JAX/Pallas port of the PyTorch Preprocessing module (bias-free 1x1 convs)."""

    def __init__(self, input_dims, output_dim, key):
        self.input_dims = dict(input_dims)
        self.output_dim = output_dim
        self.weights = {}
        for layer, dim in self.input_dims.items():
            key, sub = jax.random.split(key)
            # Deterministic synthetic init (roughly kaiming-uniform scale).
            bound = 1.0 / (dim ** 0.5)
            self.weights[layer] = jax.random.uniform(
                sub, (output_dim, dim), dtype=jnp.float32,
                minval=-bound, maxval=bound,
            )

    def __call__(self, features):
        layers = [l for l in features if l in self.weights]
        xs = [features[l] for l in layers]
        ws = [self.weights[l] for l in layers]
        return fused_preprocess(xs, ws, self.output_dim)


if __name__ == "__main__":
    key = jax.random.PRNGKey(0)

    input_dims = {"layer1": 4, "layer2": 6}
    output_dim = 8
    N, H, W = 2, 16, 16

    k_mod, k1, k2 = jax.random.split(key, 3)
    module = Preprocessing(input_dims, output_dim, k_mod)

    features = {
        "layer1": jax.random.normal(k1, (N, input_dims["layer1"], H, W), jnp.float32),
        "layer2": jax.random.normal(k2, (N, input_dims["layer2"], H, W), jnp.float32),
    }

    out = module(features)
    out = jax.block_until_ready(out)

    # Reference check against plain-JAX 1x1 conv (einsum over channels) + concat.
    ref = jnp.concatenate(
        [
            jnp.einsum("nchw,oc->nohw", features[l], module.weights[l])
            for l in ["layer1", "layer2"]
        ],
        axis=1,
    )
    assert out.shape == (N, output_dim * len(input_dims), H, W), out.shape
    assert jnp.allclose(out, ref, atol=1e-5, rtol=1e-5)

    print("KERNEL_OK")
</pallas_src>

<mosaic_0001>
module attributes {stable_mosaic.version = 11 : i64} {
  func.func @kernel(%arg0: i32, %arg1: i32, %arg2: memref<8x4xf32, #tpu.memory_space<vmem>>, %arg3: memref<8x6xf32, #tpu.memory_space<vmem>>, %arg4: memref<1x4x128xf32, #tpu.memory_space<vmem>>, %arg5: memref<1x6x128xf32, #tpu.memory_space<vmem>>, %arg6: memref<1x16x128xf32, #tpu.memory_space<vmem>>) attributes {dimension_semantics = [#tpu.dimension_semantics<parallel>, #tpu.dimension_semantics<parallel>], iteration_bounds = array<i64: 2, 2>, scalar_prefetch = 0 : i64, scratch_operands = 0 : i64, tpu.core_type = #tpu.core_type<tc>, window_params = [{pipeline_mode = #tpu.pipeline_mode<synchronous>, transform_indices = @transform_0, window_bounds = array<i64: 8, 4>}, {pipeline_mode = #tpu.pipeline_mode<synchronous>, transform_indices = @transform_1, window_bounds = array<i64: 8, 6>}, {transform_indices = @transform_2, window_bounds = array<i64: 1, 4, 128>}, {transform_indices = @transform_3, window_bounds = array<i64: 1, 6, 128>}, {transform_indices = @transform_4, window_bounds = array<i64: 1, 16, 128>}]} {
    %c0 = arith.constant 0 : index
    %c0_0 = arith.constant 0 : index
    %0 = vector.load %arg2[%c0, %c0_0] : memref<8x4xf32, #tpu.memory_space<vmem>>, vector<8x4xf32>
    %c0_1 = arith.constant 0 : index
    %c0_2 = arith.constant 0 : index
    %c0_3 = arith.constant 0 : index
    %1 = vector.load %arg4[%c0_1, %c0_2, %c0_3] : memref<1x4x128xf32, #tpu.memory_space<vmem>>, vector<1x4x128xf32>
    %2 = vector.shape_cast %1 : vector<1x4x128xf32> to vector<4x128xf32>
    %cst = arith.constant dense<0.000000e+00> : vector<8x128xf32>
    %3 = tpu.matmul %0, %2, %cst {dimension_numbers = #tpu.dot_dimension_numbers<[1], [0], [0], [1], [0, 0, 1, 1], [], []>} : vector<8x4xf32>, vector<4x128xf32>, vector<8x128xf32> -> vector<8x128xf32>
    %c0_4 = arith.constant 0 : index
    %c0_5 = arith.constant 0 : index
    %c0_6 = arith.constant 0 : index
    %4 = vector.load %arg6[%c0_4, %c0_5, %c0_6] : memref<1x16x128xf32, #tpu.memory_space<vmem>>, vector<1x8x128xf32>
    %5 = vector.shape_cast %4 : vector<1x8x128xf32> to vector<8x128xf32>
    %6 = vector.shape_cast %3 : vector<8x128xf32> to vector<1x8x128xf32>
    tpu.vector_store %arg6[%c0_4, %c0_5, %c0_6], %6 {strides = array<i32>} : memref<1x16x128xf32, #tpu.memory_space<vmem>>, vector<1x8x128xf32>,
    %c0_7 = arith.constant 0 : index
    %c0_8 = arith.constant 0 : index
    %7 = vector.load %arg3[%c0_7, %c0_8] : memref<8x6xf32, #tpu.memory_space<vmem>>, vector<8x6xf32>
    %c0_9 = arith.constant 0 : index
    %c0_10 = arith.constant 0 : index
    %c0_11 = arith.constant 0 : index
    %8 = vector.load %arg5[%c0_9, %c0_10, %c0_11] : memref<1x6x128xf32, #tpu.memory_space<vmem>>, vector<1x6x128xf32>
    %9 = vector.shape_cast %8 : vector<1x6x128xf32> to vector<6x128xf32>
    %cst_12 = arith.constant dense<0.000000e+00> : vector<8x128xf32>
    %10 = tpu.matmul %7, %9, %cst_12 {dimension_numbers = #tpu.dot_dimension_numbers<[1], [0], [0], [1], [0, 0, 1, 1], [], []>} : vector<8x6xf32>, vector<6x128xf32>, vector<8x128xf32> -> vector<8x128xf32>
    %c0_13 = arith.constant 0 : index
    %c8 = arith.constant 8 : index
    %c0_14 = arith.constant 0 : index
    %11 = vector.load %arg6[%c0_13, %c8, %c0_14] : memref<1x16x128xf32, #tpu.memory_space<vmem>>, vector<1x8x128xf32>
    %12 = vector.shape_cast %11 : vector<1x8x128xf32> to vector<8x128xf32>
    %13 = vector.shape_cast %10 : vector<8x128xf32> to vector<1x8x128xf32>
    tpu.vector_store %arg6[%c0_13, %c8, %c0_14], %13 {strides = array<i32>} : memref<1x16x128xf32, #tpu.memory_space<vmem>>, vector<1x8x128xf32>,
    return
  }
  func.func @transform_0(%arg0: i32, %arg1: i32) -> (i32, i32) {
    %c0_i32 = arith.constant 0 : i32
    %c0_i32_0 = arith.constant 0 : i32
    %c0_i32_1 = arith.constant 0 : i32
    return %c0_i32, %c0_i32_0 : i32, i32
  }
  func.func @transform_1(%arg0: i32, %arg1: i32) -> (i32, i32) {
    %c0_i32 = arith.constant 0 : i32
    %c0_i32_0 = arith.constant 0 : i32
    %c0_i32_1 = arith.constant 0 : i32
    return %c0_i32, %c0_i32_0 : i32, i32
  }
  func.func @transform_2(%arg0: i32, %arg1: i32) -> (i32, i32, i32) {
    %c0_i32 = arith.constant 0 : i32
    %c0_i32_0 = arith.constant 0 : i32
    return %arg1, %c0_i32, %arg0 : i32, i32, i32
  }
  func.func @transform_3(%arg0: i32, %arg1: i32) -> (i32, i32, i32) {
    %c0_i32 = arith.constant 0 : i32
    %c0_i32_0 = arith.constant 0 : i32
    return %arg1, %c0_i32, %arg0 : i32, i32, i32
  }
  func.func @transform_4(%arg0: i32, %arg1: i32) -> (i32, i32, i32) {
    %c0_i32 = arith.constant 0 : i32
    %c0_i32_0 = arith.constant 0 : i32
    return %arg1, %c0_i32, %arg0 : i32, i32, i32
  }
}

</mosaic_0001>

<llo_original>
// kernel: tpu_custom_call.1
$region0: #{tpu_custom_call.1}
  #allocation0 [shape = 'u32[]', space=smem, size = 0x4, offset = 0x4, fixed_abs, tag = 'smem constant byte address 0x4 - core index']
  #allocation1 [shape = 'u32[144,128]{1,0:T(1,128)}', space=vmem, size = 0x12000, scoped, tag = 'internal scratch']
  %s0 = inlined_call_operand.vmem [shape: f32[8,4], index: 0, kind: input, shape index: {}]
  %s1 = inlined_call_operand.vmem [shape: f32[8,6], index: 1, kind: input, shape index: {}]
  %s2 = inlined_call_operand.vmem [shape: f32[2,4,256], index: 2, kind: input, shape index: {}]
  %s3 = inlined_call_operand.vmem [shape: f32[2,6,256], index: 3, kind: input, shape index: {}]
  %s4 = inlined_call_operand.hbm [shape: f32[2,16,256], index: 4, kind: output, shape index: {}]
  %s5 = sld [smem:[#allocation0]]
  $region49: #{tpu_custom_call.1} parent=0
    _
  %s7 = ssub.s32 1, %s5
  %s8 = scalar_select 0, %s7, %s5
  $region1: #{tpu_custom_call.1} parent=0
    #allocation2 [shape = 'u8[16384]{0}', space=vmem, size = 0x4000, scoped, tag = 'output window, operand 0']
    #allocation3 [shape = 's32[2]{0}', space=sflag, size = 0x8, scoped, tag = 'scoped memory for tpu_custom_call.1']
    %9 = vsyncpa [#allocation3], 0
    %s10 = scalar_lea.sflag [#allocation3], 1
    %11 = vsyncpa %s10, 0
    loop: start=0, step=1, limit=6
    $region2: #{tpu_custom_call.1} parent=1 // loop_pre_header
      _
    $region3: #{tpu_custom_call.1} parent=1 // loop_header
      %s13 = sphi 0, %s17
      %p14 = scmp.ge.s32.totalorder %s13, 6
      %s20 = sphi 0, %s32
      %s21 = sphi 0, %s28
      %s22 = sphi 0, %s20
      %s23 = sphi 0, %s21
      %s24 = sphi 0, %s22
      %s25 = sphi 0, %s23
      %s33 = sphi 0, %s33
      %s35 = sphi 0, %s33
      %s36 = sphi 0, %s35
      %s50 = sphi 0, %s36
      %s54 = sphi 0, %s54
      %s56 = sphi 0, %s54
      %s57 = sphi 0, %s56
      %s71 = sphi 0, %s57
      %s79 = sphi 0, %s81
      %s82 = sphi 0, %s79
      %s83 = sphi 0, %s82
      %s99 = sphi 0, %s83
      %s107 = sphi 0, %s109
      %s110 = sphi 0, %s107
      %s111 = sphi 0, %s110
      %s127 = sphi 0, %s111
      %s135 = sphi 0, %s137
      %s138 = sphi 0, %s135
      %s139 = sphi 0, %s138
      %s155 = sphi 0, %s139
    $region4: #{tpu_custom_call.1} parent=1 // loop_header_branch
      %16 = sbr.rel (%p14) target = $region8
    $region5: #{tpu_custom_call.1} parent=1 // loop_body
      %s18 = ssub.s32 %s13, 1
      %s19 = ssub.s32 %s13, 2
      %s26 = sadd.s32 1, %s21
      %p27 = scmp.ge.s32.totalorder %s26, 2
      %s28 = scalar_select %p27, 0, %s26
      %s29 = sadd.s32 1, %s20
      %s30 = scalar_select %p27, %s29, %s20
      %p31 = scmp.ge.s32.totalorder %s30, 2
      %s32 = scalar_select %p31, 0, %s30
      %s34 = sadd.s32 %s33, 1
      %p37 = scmp.eq.s32.totalorder %s13, 3
      %p38 = scmp.ne.s32.totalorder %s33, %s35
      %p39 = scmp.eq.s32.totalorder %s13, 0
      %p40 = por %p38, %p39
      %p41 = scmp.ne.s32.totalorder %s33, %s35
      %p42 = scmp.eq.s32.totalorder %s18, 3
      %p43 = por %p41, %p42
      %p44 = scmp.ne.s32.totalorder %s35, %s36
      %p45 = scmp.eq.s32.totalorder %s18, 0
      %p46 = por %p44, %p45
      %p47 = scmp.ne.s32.totalorder %s35, %s36
      %p48 = scmp.eq.s32.totalorder %s19, 3
      %p49 = por %p47, %p48
      %p51 = scmp.ne.s32.totalorder %s36, %s50
      %p52 = scmp.eq.s32.totalorder %s19, 0
      %p53 = por %p51, %p52
      %s55 = sadd.s32 %s54, 1
      %p58 = scmp.eq.s32.totalorder %s13, 3
      %p59 = scmp.ne.s32.totalorder %s54, %s56
      %p60 = scmp.eq.s32.totalorder %s13, 0
      %p61 = por %p59, %p60
      %p62 = scmp.ne.s32.totalorder %s54, %s56
      %p63 = scmp.eq.s32.totalorder %s18, 3
      %p64 = por %p62, %p63
      %p65 = scmp.ne.s32.totalorder %s56, %s57
      %p66 = scmp.eq.s32.totalorder %s18, 0
      %p67 = por %p65, %p66
      %p68 = scmp.ne.s32.totalorder %s56, %s57
      %p69 = scmp.eq.s32.totalorder %s19, 3
      %p70 = por %p68, %p69
      %p72 = scmp.ne.s32.totalorder %s57, %s71
      %p73 = scmp.eq.s32.totalorder %s19, 0
      %p74 = por %p72, %p73
      %s75 = ssub.s32 %s21, %s28
      %s76 = ssub.s32 %s20, %s32
      %s77 = sor.u32 %s75, %s76
      %p78 = scmp.eq.s32.totalorder %s77, 0
      %s80 = sadd.s32 %s79, 1
      %s81 = scalar_select %p78, %s79, %s80
      %p84 = pneg %p78
      %p85 = scmp.eq.s32.totalorder %s13, 3
      %p86 = por %p84, %p85
      %p87 = scmp.ne.s32.totalorder %s79, %s82
      %p88 = scmp.eq.s32.totalorder %s13, 0
      %p89 = por %p87, %p88
      %p90 = scmp.ne.s32.totalorder %s79, %s82
      %p91 = scmp.eq.s32.totalorder %s18, 3
      %p92 = por %p90, %p91
      %p93 = scmp.ne.s32.totalorder %s82, %s83
      %p94 = scmp.eq.s32.totalorder %s18, 0
      %p95 = por %p93, %p94
      %p96 = scmp.ne.s32.totalorder %s82, %s83
      %p97 = scmp.eq.s32.totalorder %s19, 3
      %p98 = por %p96, %p97
      %p100 = scmp.ne.s32.totalorder %s83, %s99
      %p101 = scmp.eq.s32.totalorder %s19, 0
      %p102 = por %p100, %p101
      %s103 = ssub.s32 %s21, %s28
      %s104 = ssub.s32 %s20, %s32
      %s105 = sor.u32 %s103, %s104
      %p106 = scmp.eq.s32.totalorder %s105, 0
      %s108 = sadd.s32 %s107, 1
      %s109 = scalar_select %p106, %s107, %s108
      %p112 = pneg %p106
      %p113 = scmp.eq.s32.totalorder %s13, 3
      %p114 = por %p112, %p113
      %p115 = scmp.ne.s32.totalorder %s107, %s110
      %p116 = scmp.eq.s32.totalorder %s13, 0
      %p117 = por %p115, %p116
      %p118 = scmp.ne.s32.totalorder %s107, %s110
      %p119 = scmp.eq.s32.totalorder %s18, 3
      %p120 = por %p118, %p119
      %p121 = scmp.ne.s32.totalorder %s110, %s111
      %p122 = scmp.eq.s32.totalorder %s18, 0
      %p123 = por %p121, %p122
      %p124 = scmp.ne.s32.totalorder %s110, %s111
      %p125 = scmp.eq.s32.totalorder %s19, 3
      %p126 = por %p124, %p125
      %p128 = scmp.ne.s32.totalorder %s111, %s127
      %p129 = scmp.eq.s32.totalorder %s19, 0
      %p130 = por %p128, %p129
      %s131 = ssub.s32 %s21, %s28
      %s132 = ssub.s32 %s20, %s32
      %s133 = sor.u32 %s131, %s132
      %p134 = scmp.eq.s32.totalorder %s133, 0
      %s136 = sadd.s32 %s135, 1
      %s137 = scalar_select %p134, %s135, %s136
      %p140 = pneg %p134
      %p141 = scmp.eq.s32.totalorder %s13, 3
      %p142 = por %p140, %p141
      %p143 = scmp.ne.s32.totalorder %s135, %s138
      %p144 = scmp.eq.s32.totalorder %s13, 0
      %p145 = por %p143, %p144
      %p146 = scmp.ne.s32.totalorder %s135, %s138
      %p147 = scmp.eq.s32.totalorder %s18, 3
      %p148 = por %p146, %p147
      %p149 = scmp.ne.s32.totalorder %s138, %s139
      %p150 = scmp.eq.s32.totalorder %s18, 0
      %p151 = por %p149, %p150
      %p152 = scmp.ne.s32.totalorder %s138, %s139
      %p153 = scmp.eq.s32.totalorder %s19, 3
      %p154 = por %p152, %p153
      %p156 = scmp.ne.s32.totalorder %s139, %s155
      %p157 = scmp.eq.s32.totalorder %s19, 0
      %p158 = por %p156, %p157
      %p159 = scmp.le.s32.totalorder 1, %s13
      %p160 = scmp.lt.s32.totalorder %s13, 5
      %p161 = pnand %p159, %p160
      %p162 = pneg %p161
      // Predicated region
      $region9: #{tpu_custom_call.1} parent=5 // pred_check
        _
      $region10: #{tpu_custom_call.1} parent=5 // pred_check_branch
        %164 = sbr.rel (%p161) target = $region12
      $region11: #{tpu_custom_call.1} parent=5 // pred_region
        %s165 = ssub.s32 %s13, 1
        // Predicated region
        $region13: #{tpu_custom_call.1} parent=11 // pred_check
          %p166 = pneg %p46
        $region14: #{tpu_custom_call.1} parent=11 // pred_check_branch
          %168 = sbr.rel (%p166) target = $region16
        $region15: #{tpu_custom_call.1} parent=11 // pred_region
          _
        $region16: #{tpu_custom_call.1} parent=11 // pred_fallthru
          _
        // Predicated region
        $region17: #{tpu_custom_call.1} parent=11 // pred_check
          %p169 = pneg %p67
        $region18: #{tpu_custom_call.1} parent=11 // pred_check_branch
          %171 = sbr.rel (%p169) target = $region20
        $region19: #{tpu_custom_call.1} parent=11 // pred_region
          _
        $region20: #{tpu_custom_call.1} parent=11 // pred_fallthru
          _
      $region12: #{tpu_custom_call.1} parent=5 // pred_fallthru
        _
      %p172 = scmp.lt.s32.totalorder %s13, 4
      // Predicated region
      $region21: #{tpu_custom_call.1} parent=5 // pred_check
        %p173 = pneg %p172
      $region22: #{tpu_custom_call.1} parent=5 // pred_check_branch
        %175 = sbr.rel (%p173) target = $region24
      $region23: #{tpu_custom_call.1} parent=5 // pred_region
        // Predicated region
        $region25: #{tpu_custom_call.1} parent=23 // pred_check
          %p176 = pneg %p89
        $region26: #{tpu_custom_call.1} parent=23 // pred_check_branch
          %178 = sbr.rel (%p176) target = $region28
        $region27: #{tpu_custom_call.1} parent=23 // pred_region
          %p179 = scmp.lt.s32.totalorder %s21, 1
          %s180 = scalar_select %p179, %s21, 1
          %p181 = scmp.lt.s32.totalorder %s20, 1
          %s182 = scalar_select %p181, %s20, 1
          %s183 = smul.addr %s180, 2
          %s184 = sadd.s32 %s182, %s183
          %s185 = smul.addr %s184, 4
          %s186 = scalar_lea.vmem %s2, %s185
        $region28: #{tpu_custom_call.1} parent=23 // pred_fallthru
          _
        // Predicated region
        $region29: #{tpu_custom_call.1} parent=23 // pred_check
          %p187 = pneg %p117
        $region30: #{tpu_custom_call.1} parent=23 // pred_check_branch
          %189 = sbr.rel (%p187) target = $region32
        $region31: #{tpu_custom_call.1} parent=23 // pred_region
          %p190 = scmp.lt.s32.totalorder %s21, 1
          %s191 = scalar_select %p190, %s21, 1
          %p192 = scmp.lt.s32.totalorder %s20, 1
          %s193 = scalar_select %p192, %s20, 1
          %s194 = smul.addr %s191, 2
          %s195 = sadd.s32 %s193, %s194
          %s196 = smul.addr %s195, 8
          %s197 = scalar_lea.vmem %s3, %s196
        $region32: #{tpu_custom_call.1} parent=23 // pred_fallthru
          _
      $region24: #{tpu_custom_call.1} parent=5 // pred_fallthru
        _
      %p198 = scmp.le.s32.totalorder 1, %s13
      %p199 = scmp.lt.s32.totalorder %s13, 5
      %p200 = pnand %p198, %p199
      %p201 = pneg %p200
      // Predicated region
      $region33: #{tpu_custom_call.1} parent=5 // pred_check
        _
      $region34: #{tpu_custom_call.1} parent=5 // pred_check_branch
        %203 = sbr.rel (%p200) target = $region36
      $region35: #{tpu_custom_call.1} parent=5 // pred_region
        %s204 = ssub.s32 %s13, 1
        %p205 = pneg %p46
        %p206 = pneg %p43
        %p207 = pneg %p67
        %p208 = pneg %p64
        %p209 = scmp.lt.s32.totalorder %s23, 1
        %s210 = scalar_select %p209, %s23, 1
        %p211 = scmp.lt.s32.totalorder %s22, 1
        %s212 = scalar_select %p211, %s22, 1
        %s213 = smul.addr %s210, 2
        %s214 = sadd.s32 %s212, %s213
        %s215 = smul.addr %s214, 4
        %s216 = scalar_lea.vmem %s2, %s215
        %p217 = pneg %p95
        %p218 = pneg %p92
        %p219 = scmp.lt.s32.totalorder %s23, 1
        %s220 = scalar_select %p219, %s23, 1
        %p221 = scmp.lt.s32.totalorder %s22, 1
        %s222 = scalar_select %p221, %s22, 1
        %s223 = smul.addr %s220, 2
        %s224 = sadd.s32 %s222, %s223
        %s225 = smul.addr %s224, 8
        %s226 = scalar_lea.vmem %s3, %s225
        %p227 = pneg %p123
        %p228 = pneg %p120
        %p229 = pneg %p151
        %p230 = pneg %p148
        %s231 = sand.u32 %s138, 1
        %s232 = scalar_lea.sflag [#allocation3], %s231
        %s233 = sand.u32 %s138, 1
        %s234 = smul.addr %s233, 16
        %s235 = scalar_lea.vmem [#allocation2], %s234
        %p236 = scmp.lt.s32.totalorder %s23, 1
        %s237 = scalar_select %p236, %s23, 1
        %p238 = scmp.lt.s32.totalorder %s22, 1
        %s239 = scalar_select %p238, %s22, 1
        %s240 = smul.addr %s237, 2
        %s241 = sadd.s32 %s239, %s240
        %s242 = smul.addr %s241, 4
        %s243 = scalar_lea.vmem %s2, %s242
        %p244 = scmp.lt.s32.totalorder %s23, 1
        %s245 = scalar_select %p244, %s23, 1
        %p246 = scmp.lt.s32.totalorder %s22, 1
        %s247 = scalar_select %p246, %s22, 1
        %s248 = smul.addr %s245, 2
        %s249 = sadd.s32 %s247, %s248
        %s250 = smul.addr %s249, 8
        %s251 = scalar_lea.vmem %s3, %s250
        %v252 = vld [vmem:[%s0] sm:$0xff]
        %v253 = vld [vmem:[%s243] sm:$0xf]
        %vm254 = vcmask 31744
        %v256 = vsel %vm254, %v252, 0
        %vm258 = vcmask 1043456
        %v260 = vsel %vm258, %v253, 0
        %262 = vmatprep.subr.mxu0 0.0
        %263 = vmatpush1.msra.mxu0 %v260
        %264 = vmatprep.subr.mxu0 0.0
        %265 = vmatpush1.msra.mxu0 0.0
        %266 = vmatprep.subr.mxu0 0.0
        %267 = vmatpush1.msra.mxu0 0.0
        %268 = vmatprep.subr.mxu0 0.0
        %269 = vmatpush1.msra.mxu0 0.0
        %270 = vmatprep.subr.mxu0 0.0
        %271 = vmatpush1.msra.mxu0 0.0
        %272 = vmatprep.subr.mxu0 0.0
        %273 = vmatpush1.msra.mxu0 0.0
        %274 = vmatprep.subr.mxu0 0.0
        %275 = vmatpush1.msra.mxu0 0.0
        %276 = vmatprep.subr.mxu0 0.0
        %277 = vmatpush1.msra.mxu0 0.0
        %278 = vmatprep.subr.mxu0 0.0
        %279 = vmatpush1.msra.mxu0 0.0
        %280 = vmatprep.subr.mxu0 0.0
        %281 = vmatpush1.msra.mxu0 0.0
        %282 = vmatprep.subr.mxu0 0.0
        %283 = vmatpush1.msra.mxu0 0.0
        %284 = vmatprep.subr.mxu0 0.0
        %285 = vmatpush1.msra.mxu0 0.0
        %286 = vmatprep.subr.mxu0 0.0
        %287 = vmatpush1.msra.mxu0 0.0
        %288 = vmatprep.subr.mxu0 0.0
        %289 = vmatpush1.msra.mxu0 0.0
        %290 = vmatprep.subr.mxu0 0.0
        %291 = vmatpush1.msra.mxu0 0.0
        %292 = vmatprep.subr.mxu0 0.0
        %293 = vmatpush1.msra.mxu0 0.0
        %294 = vmatprep.subr.mxu0 0.0
        %295 = vmatpush1.msra.mxu0 0.0
        %296 = vmatprep.subr.mxu0 0.0
        %297 = vmatpush1.msra.mxu0 0.0
        %298 = vmatprep.subr.mxu0 0.0
        %299 = vmatpush1.msra.mxu0 0.0
        %300 = vmatprep.subr.mxu0 0.0
        %301 = vmatpush1.msra.mxu0 0.0
        %302 = vmatprep.subr.mxu0 0.0
        %303 = vmatpush1.msra.mxu0 0.0
        %304 = vmatprep.subr.mxu0 0.0
        %305 = vmatpush1.msra.mxu0 0.0
        %306 = vmatprep.subr.mxu0 0.0
        %307 = vmatpush1.msra.mxu0 0.0
        %308 = vmatprep.subr.mxu0 0.0
        %309 = vmatpush1.msra.mxu0 0.0
        %310 = vmatprep.subr.mxu0 0.0
        %311 = vmatpush1.msra.mxu0 0.0
        %312 = vmatprep.subr.mxu0 0.0
        %313 = vmatpush1.msra.mxu0 0.0
        %314 = vmatprep.subr.mxu0 0.0
        %315 = vmatpush1.msra.mxu0 0.0
        %316 = vmatprep.subr.mxu0 0.0
        %317 = vmatpush1.msra.mxu0 0.0
        %318 = vmatprep.subr.mxu0 0.0
        %319 = vmatpush1.msra.mxu0 0.0
        %320 = vmatprep.subr.mxu0 0.0
        %321 = vmatpush1.msra.mxu0 0.0
        %322 = vmatprep.subr.mxu0 0.0
        %323 = vmatpush1.msra.mxu0 0.0
        %324 = vmatprep.subr.mxu0 0.0
        %325 = vmatpush1.msra.mxu0 0.0
        %326 = vmatprep.mubr.f32.mxu0 0.0
        %327 = vmatmul.mubr.f32.gmra.mrb[0].mxu0 %v256
        %v328 = vpop.f32.mrb[0].mxu0
        %v329 = vadd.f32 0.0, %v328
        %v330 = vpop.f32.mrb[0].mxu0
        %331 = vdwg.mxu0
        %332 = vst [vmem:[%s235] sm:$0xff] %v329
        %v333 = vld [vmem:[%s1] sm:$0xff]
        %v334 = vld [vmem:[%s251] sm:$0x3f]
        %vm335 = vcmask 48128
        %v337 = vsel %vm335, %v333, 0
        %vm339 = vcmask 1045504
        %v341 = vsel %vm339, %v334, 0
        %343 = vmatprep.subr.mxu0 0.0
        %344 = vmatpush1.msra.mxu0 %v341
        %345 = vmatprep.subr.mxu0 0.0
        %346 = vmatpush1.msra.mxu0 0.0
        %347 = vmatprep.subr.mxu0 0.0
        %348 = vmatpush1.msra.mxu0 0.0
        %349 = vmatprep.subr.mxu0 0.0
        %350 = vmatpush1.msra.mxu0 0.0
        %351 = vmatprep.subr.mxu0 0.0
        %352 = vmatpush1.msra.mxu0 0.0
        %353 = vmatprep.subr.mxu0 0.0
        %354 = vmatpush1.msra.mxu0 0.0
        %355 = vmatprep.subr.mxu0 0.0
        %356 = vmatpush1.msra.mxu0 0.0
        %357 = vmatprep.subr.mxu0 0.0
        %358 = vmatpush1.msra.mxu0 0.0
        %359 = vmatprep.subr.mxu0 0.0
        %360 = vmatpush1.msra.mxu0 0.0
        %361 = vmatprep.subr.mxu0 0.0
        %362 = vmatpush1.msra.mxu0 0.0
        %363 = vmatprep.subr.mxu0 0.0
        %364 = vmatpush1.msra.mxu0 0.0
        %365 = vmatprep.subr.mxu0 0.0
        %366 = vmatpush1.msra.mxu0 0.0
        %367 = vmatprep.subr.mxu0 0.0
        %368 = vmatpush1.msra.mxu0 0.0
        %369 = vmatprep.subr.mxu0 0.0
        %370 = vmatpush1.msra.mxu0 0.0
        %371 = vmatprep.subr.mxu0 0.0
        %372 = vmatpush1.msra.mxu0 0.0
        %373 = vmatprep.subr.mxu0 0.0
        %374 = vmatpush1.msra.mxu0 0.0
        %375 = vmatprep.subr.mxu0 0.0
        %376 = vmatpush1.msra.mxu0 0.0
        %377 = vmatprep.subr.mxu0 0.0
        %378 = vmatpush1.msra.mxu0 0.0
        %379 = vmatprep.subr.mxu0 0.0
        %380 = vmatpush1.msra.mxu0 0.0
        %381 = vmatprep.subr.mxu0 0.0
        %382 = vmatpush1.msra.mxu0 0.0
        %383 = vmatprep.subr.mxu0 0.0
        %384 = vmatpush1.msra.mxu0 0.0
        %385 = vmatprep.subr.mxu0 0.0
        %386 = vmatpush1.msra.mxu0 0.0
        %387 = vmatprep.subr.mxu0 0.0
        %388 = vmatpush1.msra.mxu0 0.0
        %389 = vmatprep.subr.mxu0 0.0
        %390 = vmatpush1.msra.mxu0 0.0
        %391 = vmatprep.subr.mxu0 0.0
        %392 = vmatpush1.msra.mxu0 0.0
        %393 = vmatprep.subr.mxu0 0.0
        %394 = vmatpush1.msra.mxu0 0.0
        %395 = vmatprep.subr.mxu0 0.0
        %396 = vmatpush1.msra.mxu0 0.0
        %397 = vmatprep.subr.mxu0 0.0
        %398 = vmatpush1.msra.mxu0 0.0
        %399 = vmatprep.subr.mxu0 0.0
        %400 = vmatpush1.msra.mxu0 0.0
        %401 = vmatprep.subr.mxu0 0.0
        %402 = vmatpush1.msra.mxu0 0.0
        %403 = vmatprep.subr.mxu0 0.0
        %404 = vmatpush1.msra.mxu0 0.0
        %405 = vmatprep.subr.mxu0 0.0
        %406 = vmatpush1.msra.mxu0 0.0
        %407 = vmatprep.mubr.f32.mxu0 0.0
        %408 = vmatmul.mubr.f32.gmra.mrb[0].mxu0 %v337
        %v409 = vpop.f32.mrb[0].mxu0
        %v410 = vadd.f32 0.0, %v409
        %v411 = vpop.f32.mrb[0].mxu0
        %412 = vdwg.mxu0
        %413 = vst [vmem:[%s235 + $0x8] sm:$0xff] %v410
        %s414 = sand.u32 %s138, 1
        %s415 = scalar_lea.sflag [#allocation3], %s414
        %s416 = sand.u32 %s138, 1
        %s417 = smul.addr %s416, 16
        %s418 = scalar_lea.vmem [#allocation2], %s417
        // Predicated region
        $region37: #{tpu_custom_call.1} parent=35 // pred_check
          %p419 = pneg %p148
        $region38: #{tpu_custom_call.1} parent=35 // pred_check_branch
          %421 = sbr.rel (%p419) target = $region40
        $region39: #{tpu_custom_call.1} parent=35 // pred_region
          %s423 = ssub.s32 256, 256
          %424 = vsyncadd %s415, %s423
          %s425 = smul.addr %s23, 4
          %s426 = sadd.s32 %s22, %s425
          %s427 = smul.addr %s426, 128
          %s428 = scalar_lea.hbm %s4, %s427
          %s429 = sshll.u32 %s418, 4
          %s430 = int_to_ptr.vmem [resolvable:$true] %s429
          %435 = dma.vmem_to_hbm [thread:$0]  %s430, 256, %s428, %s415, 128, 256, 8
        $region40: #{tpu_custom_call.1} parent=35 // pred_fallthru
          _
      $region36: #{tpu_custom_call.1} parent=5 // pred_fallthru
        _
      %p436 = scmp.le.s32.totalorder 2, %s13
      // Predicated region
      $region41: #{tpu_custom_call.1} parent=5 // pred_check
        %p437 = pneg %p436
      $region42: #{tpu_custom_call.1} parent=5 // pred_check_branch
        %439 = sbr.rel (%p437) target = $region44
      $region43: #{tpu_custom_call.1} parent=5 // pred_region
        %s440 = ssub.s32 %s13, 2
        // Predicated region
        $region45: #{tpu_custom_call.1} parent=43 // pred_check
          %p441 = pneg %p154
        $region46: #{tpu_custom_call.1} parent=43 // pred_check_branch
          %443 = sbr.rel (%p441) target = $region48
        $region47: #{tpu_custom_call.1} parent=43 // pred_region
          %s444 = sand.u32 %s139, 1
          %s445 = scalar_lea.sflag [#allocation3], %s444
          %s446 = sand.u32 %s139, 1
          %s447 = smul.addr %s446, 16
          %s448 = scalar_lea.vmem [#allocation2], %s447
          %449 = dma.done %s445, 256
        $region48: #{tpu_custom_call.1} parent=43 // pred_fallthru
          _
      $region44: #{tpu_custom_call.1} parent=5 // pred_fallthru
        _
    $region6: #{tpu_custom_call.1} parent=1 // loop_footer
      %s17 = sadd.s32 1, %s13
    $region7: #{tpu_custom_call.1} parent=1 // loop_footer_branch
      %12 = sbr.rel target = $region3
    $region8: #{tpu_custom_call.1} parent=1 // loop_exit
      _
    %450 = vsyncpa [#allocation3], 1
    %s451 = scalar_lea.sflag [#allocation3], 1
    %452 = vsyncpa %s451, 1

</llo_original>
